<compile_context>
chip_gen: v6e
topology: v6e:2x2x1
jax: 0.10.0
libtpu: 0.0.40
codegen_flags: <defaults>
</compile_context>

<pallas_src>
import functools
import math

import jax
import jax.numpy as jnp
import numpy as np
from jax.experimental import pallas as pl
from jax.experimental.pallas import tpu as pltpu

LANE = 128
_TARGET_M = 512                       # target MXU M rows per grid step
_PATCH_BYTES_BUDGET = 8 * 1024 * 1024


def _round_up(x, m):
    return (x + m - 1) // m * m


def _cdiv(a, b):
    return (a + b - 1) // b


def _vmem_limit_bytes():
    """Per-generation scoped-VMEM limit (v5e/v6e have 128 MiB, v7x 64 MiB)."""
    try:
        cap = int(getattr(pltpu.get_tpu_info(), "vmem_capacity_bytes"))
    except Exception:
        return None                    # fall back to the compiler default
    return max(32 * 1024 * 1024, min(cap * 3 // 4, 112 * 1024 * 1024))


def _effective_weight(weight_v, weight_g, KW, padding):
    # WNConv2d (weight_norm) + CausalConv2d's in-forward zeroing of weight_v.
    causal = KW // 2 if padding == "causal" else 0
    if causal:
        mask = jnp.ones_like(weight_v).at[:, :, -1, causal:].set(0.0)
        weight_v = weight_v * mask
    v_norm = jnp.sqrt(jnp.sum(weight_v * weight_v, axis=(1, 2, 3),
                              keepdims=True))
    # NOTE: PyTorch weight_norm would produce inf/nan for a fully-masked
    # channel; the tiny guard only changes that degenerate case.
    v_norm = jnp.maximum(v_norm, 1e-12)
    return weight_g * weight_v / v_norm        # (Cout, Cin, KH, KW)


def _pad_amounts(KH, KW, padding):
    # nn.ZeroPad2d pad list is [left, right, top, bottom]
    if padding == "downright":
        return KW - 1, 0, KH - 1, 0
    return KW // 2, KW // 2, KH - 1, 0         # 'down' / 'causal'


# ----------------------------------------------------------------------------
# Band path: manual row-band DMA double-buffer + fused-K im2col matmul.
# ----------------------------------------------------------------------------
def _band_conv_kernel(x_hbm, w_ref, b_ref, o_ref,
                      band_buf, band_sem, shift_ref, patch_ref,
                      *, KH, KW, TH, Wo, Cin_p, band_h):
    # x_hbm:     (N, Hin, Wp_pad, Cin_p)  bf16, HBM (manual DMA)
    # w_ref:     (KH*KW*Cin_p, Cout_p)    bf16, resident
    # b_ref:     (1, Cout_p)              f32,  resident
    # o_ref:     (TH*Wo, Cout_p)          output row tile
    # band_buf:  (2, band_h, Wp_pad, Cin_p) double-buffered input band
    # band_sem:  (2,) DMA semaphores
    # shift_ref: (KW, band_h, Wo, Cin_p)  sublane-shifted band copies
    # patch_ref: (TH*Wo, KH*KW*Cin_p)     im2col patch (bf16)
    n = pl.program_id(0)
    t = pl.program_id(1)
    num_t = pl.num_programs(1)
    slot = t % 2

    def band_copy(batch, tile, buf_slot):
        row0 = tile * TH
        return pltpu.make_async_copy(
            x_hbm.at[batch, pl.ds(row0, band_h)],
            band_buf.at[buf_slot],
            band_sem.at[buf_slot])

    # First row tile of this batch element: nothing has been prefetched yet.
    @pl.when(t == 0)
    def _():
        band_copy(n, t, slot).start()

    # Prefetch the next row tile of the same batch element (double-buffer).
    # Kept within the batch element so the pattern stays correct when the
    # batch axis is megacore-sharded.
    @pl.when(t + 1 < num_t)
    def _():
        band_copy(n, t + 1, 1 - slot).start()

    band_copy(n, t, slot).wait()

    # KW sublane-shifted copies of the band; each is reused KH times below,
    # so the expensive unaligned shift happens KW (not KH*KW) times per step.
    for kw in range(KW):
        shift_ref[kw] = band_buf[slot, :, pl.ds(kw, Wo), :]

    # im2col patch: aligned, contiguous copies only (lane offsets are
    # multiples of 128, row slices are on the major dim).
    for kh in range(KH):
        for kw in range(KW):
            tap = kh * KW + kw
            rows = shift_ref[kw, pl.ds(kh, TH), :, :]       # (TH, Wo, Cin_p)
            patch_ref[:, tap * Cin_p:(tap + 1) * Cin_p] = rows.reshape(
                TH * Wo, Cin_p)

    # Single fused-K MXU matmul with f32 accumulation, f32 bias, bf16 store.
    acc = jnp.dot(patch_ref[...], w_ref[...],
                  preferred_element_type=jnp.float32)
    o_ref[...] = (acc + b_ref[...]).astype(o_ref.dtype)


def _causal_conv2d_band(x_nhwc_pad, weight, bias, *, KH, KW, Ho, Wo,
                        compute_dtype, out_dtype):
    # x_nhwc_pad: (N, Hp, Wp, Cin) f32, already ZeroPad2d'ed.  stride == 1.
    N, Hp, Wp, Cin = x_nhwc_pad.shape
    Cout = weight.shape[0]
    Cin_p = _round_up(Cin, LANE)
    Cout_p = _round_up(Cout, LANE)

    # Adaptive row tile: target ~_TARGET_M output rows per MXU call, keep
    # TH*Wo a multiple of 8, and respect a VMEM budget for the patch scratch.
    th_unit = 8 // math.gcd(Wo, 8)
    k = max(1, _TARGET_M // (Wo * th_unit))
    k = min(k, _cdiv(Ho, th_unit))
    patch_row_bytes = Wo * KH * KW * Cin_p * 2
    while k > 1 and k * th_unit * patch_row_bytes > _PATCH_BYTES_BUDGET:
        k = max(1, k // 2)
    TH = k * th_unit

    n_row_tiles = _cdiv(Ho, TH)
    Ho_p = n_row_tiles * TH
    band_h = TH + KH - 1
    Hin = Ho_p + KH - 1                    # rows the kernel may touch
    Wp_pad = _round_up(Wp, 8)              # sublane-aligned band width

    x_pad = jnp.pad(
        x_nhwc_pad,
        ((0, 0), (0, Hin - Hp), (0, Wp_pad - Wp), (0, Cin_p - Cin)),
    ).astype(compute_dtype)

    # (Cout, Cin, KH, KW) -> fused im2col weight slab (KH*KW*Cin_p, Cout_p).
    w = jnp.transpose(weight, (2, 3, 1, 0))                 # (KH, KW, Cin, Cout)
    w = jnp.pad(w, ((0, 0), (0, 0), (0, Cin_p - Cin), (0, Cout_p - Cout)))
    w = w.reshape(KH * KW * Cin_p, Cout_p).astype(compute_dtype)
    b2 = jnp.pad(bias, (0, Cout_p - Cout)).reshape(1, Cout_p).astype(jnp.float32)

    kernel = functools.partial(_band_conv_kernel, KH=KH, KW=KW, TH=TH, Wo=Wo,
                               Cin_p=Cin_p, band_h=band_h)

    out = pl.pallas_call(
        kernel,
        out_shape=jax.ShapeDtypeStruct((N, Ho_p * Wo, Cout_p), out_dtype),
        grid=(N, n_row_tiles),
        in_specs=[
            pl.BlockSpec(memory_space=pl.ANY),              # input stays in HBM
            pl.BlockSpec((KH * KW * Cin_p, Cout_p), lambda n, t: (0, 0)),
            pl.BlockSpec((1, Cout_p), lambda n, t: (0, 0)),
        ],
        out_specs=pl.BlockSpec((None, TH * Wo, Cout_p), lambda n, t: (n, t, 0)),
        scratch_shapes=[
            pltpu.VMEM((2, band_h, Wp_pad, Cin_p), compute_dtype),
            pltpu.SemaphoreType.DMA((2,)),
            pltpu.VMEM((KW, band_h, Wo, Cin_p), compute_dtype),
            pltpu.VMEM((TH * Wo, KH * KW * Cin_p), compute_dtype),
        ],
        compiler_params=pltpu.CompilerParams(
            # Batch axis is megacore-shardable; the row-tile axis carries the
            # manual DMA double-buffer state so it stays sequential per core.
            dimension_semantics=("parallel", "arbitrary"),
            vmem_limit_bytes=_vmem_limit_bytes()),
    )(x_pad, w, b2)

    out = out.reshape(N, Ho_p, Wo, Cout_p)[:, :Ho, :, :Cout]
    return out                                   # NHWC, out_dtype


# ----------------------------------------------------------------------------
# im2col path: small Cin (stem) or stride > 1 -> wrapper im2col + Pallas matmul.
# ----------------------------------------------------------------------------
def _matmul_bias_kernel(p_ref, w_ref, b_ref, o_ref):
    acc = jnp.dot(p_ref[...], w_ref[...], preferred_element_type=jnp.float32)
    o_ref[...] = (acc + b_ref[...]).astype(o_ref.dtype)


def _causal_conv2d_im2col(x_nhwc_pad, weight, bias, *, KH, KW, stride, Ho, Wo,
                          compute_dtype, out_dtype):
    N, Hp, Wp, Cin = x_nhwc_pad.shape
    Cout = weight.shape[0]
    K = KH * KW * Cin
    K_p = _round_up(K, LANE)            # pad the TOTAL contraction dim once
    Cout_p = _round_up(Cout, LANE)

    cols = []
    for kh in range(KH):
        for kw in range(KW):
            cols.append(
                x_nhwc_pad[:, kh: kh + (Ho - 1) * stride + 1: stride,
                           kw: kw + (Wo - 1) * stride + 1: stride, :])
    p = jnp.concatenate(cols, axis=-1).reshape(N, Ho * Wo, K)

    R = Ho * Wo
    TM = min(_TARGET_M, _round_up(R, 8))
    n_row_tiles = _cdiv(R, TM)
    R_p = n_row_tiles * TM
    p = jnp.pad(p, ((0, 0), (0, R_p - R), (0, K_p - K))).astype(compute_dtype)

    w = jnp.transpose(weight, (2, 3, 1, 0)).reshape(K, Cout)  # (kh,kw,cin) major
    w = jnp.pad(w, ((0, K_p - K), (0, Cout_p - Cout))).astype(compute_dtype)
    b2 = jnp.pad(bias, (0, Cout_p - Cout)).reshape(1, Cout_p).astype(jnp.float32)

    out = pl.pallas_call(
        _matmul_bias_kernel,
        out_shape=jax.ShapeDtypeStruct((N, R_p, Cout_p), out_dtype),
        grid=(N, n_row_tiles),
        in_specs=[
            pl.BlockSpec((None, TM, K_p), lambda n, r: (n, r, 0)),
            pl.BlockSpec((K_p, Cout_p), lambda n, r: (0, 0)),
            pl.BlockSpec((1, Cout_p), lambda n, r: (0, 0)),
        ],
        out_specs=pl.BlockSpec((None, TM, Cout_p), lambda n, r: (n, r, 0)),
        compiler_params=pltpu.CompilerParams(
            dimension_semantics=("parallel", "parallel"),
            vmem_limit_bytes=_vmem_limit_bytes()),
    )(p, w, b2)

    out = out[:, :R, :Cout].reshape(N, Ho, Wo, Cout)
    return out                                   # NHWC, out_dtype


# ----------------------------------------------------------------------------
# Public entry point (matches CausalConv2d.forward semantics).
# ----------------------------------------------------------------------------
def causal_conv2d(x_nchw, weight_v, weight_g, bias, *, kernel_size, stride=1,
                  padding="downright", compute_dtype=jnp.bfloat16,
                  out_dtype=None):
    assert padding in ("downright", "down", "causal")
    if isinstance(kernel_size, int):
        kernel_size = (kernel_size, kernel_size)
    KH, KW = kernel_size
    if out_dtype is None:
        out_dtype = compute_dtype

    N, Cin, H, W = x_nchw.shape
    weight = _effective_weight(weight_v, weight_g, KW, padding)
    pad_l, pad_r, pad_t, pad_b = _pad_amounts(KH, KW, padding)
    Hp, Wp = H + pad_t + pad_b, W + pad_l + pad_r
    Ho = (Hp - KH) // stride + 1
    Wo = (Wp - KW) // stride + 1

    x_nhwc = jnp.transpose(x_nchw, (0, 2, 3, 1))
    x_pad = jnp.pad(x_nhwc, ((0, 0), (pad_t, pad_b), (pad_l, pad_r), (0, 0)))

    if stride == 1 and Cin >= LANE // 2:
        out_nhwc = _causal_conv2d_band(
            x_pad, weight, bias, KH=KH, KW=KW, Ho=Ho, Wo=Wo,
            compute_dtype=compute_dtype, out_dtype=out_dtype)
    else:
        out_nhwc = _causal_conv2d_im2col(
            x_pad, weight, bias, KH=KH, KW=KW, stride=stride, Ho=Ho, Wo=Wo,
            compute_dtype=compute_dtype, out_dtype=out_dtype)

    return jnp.transpose(out_nhwc, (0, 3, 1, 2))  # NCHW, out_dtype


# ----------------------------------------------------------------------------
# Reference + self-test.
# ----------------------------------------------------------------------------
def _reference(x_nchw, weight_v, weight_g, bias, *, kernel_size, stride,
               padding, operand_dtype=jnp.bfloat16):
    KH, KW = kernel_size
    weight = _effective_weight(weight_v, weight_g, KW, padding)
    # Round operands like the kernel (bf16 MXU inputs, f32 accumulation).
    x = x_nchw.astype(operand_dtype).astype(jnp.float32)
    weight = weight.astype(operand_dtype).astype(jnp.float32)
    pad_l, pad_r, pad_t, pad_b = _pad_amounts(KH, KW, padding)
    x_pad = jnp.pad(x, ((0, 0), (0, 0), (pad_t, pad_b), (pad_l, pad_r)))
    y = jax.lax.conv_general_dilated(
        x_pad, weight, window_strides=(stride, stride), padding="VALID",
        dimension_numbers=("NCHW", "OIHW", "NCHW"),
        precision=jax.lax.Precision.HIGHEST)
    return y + bias.reshape(1, -1, 1, 1)


def _run_case(key, *, N, Cin, Cout, H, W, K, stride, padding):
    k1, k2, k3 = jax.random.split(key, 3)
    x = jax.random.normal(k1, (N, Cin, H, W), dtype=jnp.float32)
    weight_v = jax.random.normal(k2, (Cout, Cin, K, K), dtype=jnp.float32) * 0.1
    # weight_norm initializes g = ||v|| per output channel; emulate that.
    weight_g = jnp.sqrt(jnp.sum(weight_v * weight_v, axis=(1, 2, 3),
                                keepdims=True))
    bias = jax.random.normal(k3, (Cout,), dtype=jnp.float32) * 0.1

    y = causal_conv2d(x, weight_v, weight_g, bias, kernel_size=(K, K),
                      stride=stride, padding=padding)
    y = jax.block_until_ready(y)
    y_ref = _reference(x, weight_v, weight_g, bias, kernel_size=(K, K),
                       stride=stride, padding=padding)
    np.testing.assert_allclose(
        np.asarray(y.astype(jnp.float32)),
        np.asarray(y_ref.astype(jnp.float32)),
        atol=5e-2, rtol=5e-2)


if __name__ == "__main__":
    key = jax.random.PRNGKey(0)
    keys = jax.random.split(key, 4)
    # Small-channel stem config from the spec (im2col path), all three paddings.
    for i, padding in enumerate(("downright", "down", "causal")):
        _run_case(keys[i], N=2, Cin=4, Cout=8, H=16, W=16, K=3,
                  stride=1, padding=padding)
    # 128-channel config exercising the band path (manual row-band DMA
    # double-buffering + fused-K im2col matmul).
    _run_case(keys[3], N=2, Cin=128, Cout=128, H=16, W=16, K=3,
              stride=1, padding="causal")
    print("KERNEL_OK")
</pallas_src>

<mosaic_0001>
module attributes {stable_mosaic.version = 11 : i64} {
  func.func @_matmul_bias_kernel(%arg0: i32, %arg1: i32, %arg2: memref<1x256x128xbf16, #tpu.memory_space<vmem>>, %arg3: memref<128x128xbf16, #tpu.memory_space<vmem>>, %arg4: memref<1x128xf32, #tpu.memory_space<vmem>>, %arg5: memref<1x256x128xbf16, #tpu.memory_space<vmem>>) attributes {dimension_semantics = [#tpu.dimension_semantics<parallel>, #tpu.dimension_semantics<parallel>], iteration_bounds = array<i64: 2, 1>, scalar_prefetch = 0 : i64, scratch_operands = 0 : i64, tpu.core_type = #tpu.core_type<tc>, window_params = [{transform_indices = @transform_0, window_bounds = array<i64: 1, 256, 128>}, {pipeline_mode = #tpu.pipeline_mode<synchronous>, transform_indices = @transform_1, window_bounds = array<i64: 128, 128>}, {pipeline_mode = #tpu.pipeline_mode<synchronous>, transform_indices = @transform_2, window_bounds = array<i64: 1, 128>}, {transform_indices = @transform_3, window_bounds = array<i64: 1, 256, 128>}]} {
    %c0 = arith.constant 0 : index
    %c0_0 = arith.constant 0 : index
    %c0_1 = arith.constant 0 : index
    %0 = vector.load %arg2[%c0, %c0_0, %c0_1] : memref<1x256x128xbf16, #tpu.memory_space<vmem>>, vector<1x256x128xbf16>
    %1 = vector.shape_cast %0 : vector<1x256x128xbf16> to vector<256x128xbf16>
    %c0_2 = arith.constant 0 : index
    %c0_3 = arith.constant 0 : index
    %2 = vector.load %arg3[%c0_2, %c0_3] : memref<128x128xbf16, #tpu.memory_space<vmem>>, vector<128x128xbf16>
    %cst = arith.constant dense<0.000000e+00> : vector<256x128xf32>
    %3 = tpu.matmul %1, %2, %cst {dimension_numbers = #tpu.dot_dimension_numbers<[1], [0], [0], [1], [0, 0, 1, 1], [], []>} : vector<256x128xbf16>, vector<128x128xbf16>, vector<256x128xf32> -> vector<256x128xf32>
    %c0_4 = arith.constant 0 : index
    %c0_5 = arith.constant 0 : index
    %4 = vector.load %arg4[%c0_4, %c0_5] : memref<1x128xf32, #tpu.memory_space<vmem>>, vector<1x128xf32>
    %5 = vector.broadcast %4 : vector<1x128xf32> to vector<256x128xf32>
    %6 = arith.addf %3, %5 : vector<256x128xf32>
    %7 = arith.truncf %6 : vector<256x128xf32> to vector<256x128xbf16>
    %c0_6 = arith.constant 0 : index
    %c0_7 = arith.constant 0 : index
    %c0_8 = arith.constant 0 : index
    %8 = vector.load %arg5[%c0_6, %c0_7, %c0_8] : memref<1x256x128xbf16, #tpu.memory_space<vmem>>, vector<1x256x128xbf16>
    %9 = vector.shape_cast %8 : vector<1x256x128xbf16> to vector<256x128xbf16>
    %10 = vector.shape_cast %7 : vector<256x128xbf16> to vector<1x256x128xbf16>
    tpu.vector_store %arg5[%c0_6, %c0_7, %c0_8], %10 {strides = array<i32>} : memref<1x256x128xbf16, #tpu.memory_space<vmem>>, vector<1x256x128xbf16>,
    return
  }
  func.func @transform_0(%arg0: i32, %arg1: i32) -> (i32, i32, i32) {
    %c0_i32 = arith.constant 0 : i32
    %c0_i32_0 = arith.constant 0 : i32
    return %arg0, %arg1, %c0_i32 : i32, i32, i32
  }
  func.func @transform_1(%arg0: i32, %arg1: i32) -> (i32, i32) {
    %c0_i32 = arith.constant 0 : i32
    %c0_i32_0 = arith.constant 0 : i32
    %c0_i32_1 = arith.constant 0 : i32
    return %c0_i32, %c0_i32_0 : i32, i32
  }
  func.func @transform_2(%arg0: i32, %arg1: i32) -> (i32, i32) {
    %c0_i32 = arith.constant 0 : i32
    %c0_i32_0 = arith.constant 0 : i32
    %c0_i32_1 = arith.constant 0 : i32
    return %c0_i32, %c0_i32_0 : i32, i32
  }
  func.func @transform_3(%arg0: i32, %arg1: i32) -> (i32, i32, i32) {
    %c0_i32 = arith.constant 0 : i32
    %c0_i32_0 = arith.constant 0 : i32
    return %arg0, %arg1, %c0_i32 : i32, i32, i32
  }
}

</mosaic_0001>

<llo_original>
// kernel: tpu_custom_call.1
$region0: #{tpu_custom_call.1}
  #allocation0 [shape = 'u32[]', space=smem, size = 0x4, offset = 0x4, fixed_abs, tag = 'smem constant byte address 0x4 - core index']
  #allocation1 [shape = 'u32[144,128]{1,0:T(1,128)}', space=vmem, size = 0x12000, scoped, tag = 'internal scratch']
  %s0 = inlined_call_operand.hbm [shape: bf16[2,256,128], index: 0, kind: input, shape index: {}]
  %s1 = inlined_call_operand.hbm [shape: bf16[128,128], index: 1, kind: input, shape index: {}]
  %s2 = inlined_call_operand.vmem [shape: f32[1,128], index: 2, kind: input, shape index: {}]
  %s3 = inlined_call_operand.hbm [shape: bf16[2,256,128], index: 3, kind: output, shape index: {}]
  %s4 = sld [smem:[#allocation0]]
  $region53: #{tpu_custom_call.1} parent=0
    _
  %s6 = ssub.s32 1, %s4
  %s7 = scalar_select 0, %s6, %s4
  $region1: #{tpu_custom_call.1} parent=0
    #allocation2 [shape = 'u8[131072]{0}', space=vmem, size = 0x20000, scoped, tag = 'input window, operand 0']
    #allocation3 [shape = 's32[2]{0}', space=sflag, size = 0x8, scoped, tag = 'scoped memory for tpu_custom_call.1']
    #allocation4 [shape = 's32[2]{0}', space=sflag, size = 0x8, scoped, tag = 'scoped memory for tpu_custom_call.1']
    #allocation5 [shape = 'u8[32768]{0}', space=vmem, size = 0x8000, scoped, tag = 'input window, operand 1, single buffered']
    #allocation6 [shape = 's32[1]{0}', space=sflag, size = 0x4, scoped, tag = 'scoped memory for tpu_custom_call.1']
    #allocation7 [shape = 'u8[131072]{0}', space=vmem, size = 0x20000, scoped, tag = 'output window, operand 0']
    %8 = vsyncpa [#allocation3], 0
    %s9 = scalar_lea.sflag [#allocation3], 1
    %10 = vsyncpa %s9, 0
    %11 = vsyncpa [#allocation6], 0
    %12 = vsyncpa [#allocation4], 0
    %s13 = scalar_lea.sflag [#allocation4], 1
    %14 = vsyncpa %s13, 0
    loop: start=0, step=1, limit=4
    $region2: #{tpu_custom_call.1} parent=1 // loop_pre_header
      _
    $region3: #{tpu_custom_call.1} parent=1 // loop_header
      %s16 = sphi 0, %s20
      %p17 = scmp.ge.s32.totalorder %s16, 4
      %s23 = sphi 0, %s35
      %s24 = sphi 0, %s31
      %s25 = sphi 0, %s23
      %s26 = sphi 0, %s24
      %s27 = sphi 0, %s25
      %s28 = sphi 0, %s26
      %s40 = sphi 0, %s42
      %s43 = sphi 0, %s40
      %s44 = sphi 0, %s43
      %s60 = sphi 0, %s44
      %s64 = sphi 0, %s64
      %s66 = sphi 0, %s64
      %s67 = sphi 0, %s66
      %s81 = sphi 0, %s67
      %s85 = sphi 0, %s85
      %s87 = sphi 0, %s85
      %s88 = sphi 0, %s87
      %s102 = sphi 0, %s88
      %s110 = sphi 0, %s112
      %s113 = sphi 0, %s110
      %s114 = sphi 0, %s113
      %s130 = sphi 0, %s114
    $region4: #{tpu_custom_call.1} parent=1 // loop_header_branch
      %19 = sbr.rel (%p17) target = $region8
    $region5: #{tpu_custom_call.1} parent=1 // loop_body
      %s21 = ssub.s32 %s16, 1
      %s22 = ssub.s32 %s16, 2
      %s29 = sadd.s32 1, %s24
      %p30 = scmp.ge.s32.totalorder %s29, 1
      %s31 = scalar_select %p30, 0, %s29
      %s32 = sadd.s32 1, %s23
      %s33 = scalar_select %p30, %s32, %s23
      %p34 = scmp.ge.s32.totalorder %s33, 2
      %s35 = scalar_select %p34, 0, %s33
      %s36 = ssub.s32 %s23, %s35
      %s37 = ssub.s32 %s24, %s31
      %s38 = sor.u32 %s36, %s37
      %p39 = scmp.eq.s32.totalorder %s38, 0
      %s41 = sadd.s32 %s40, 1
      %s42 = scalar_select %p39, %s40, %s41
      %p45 = pneg %p39
      %p46 = scmp.eq.s32.totalorder %s16, 1
      %p47 = por %p45, %p46
      %p48 = scmp.ne.s32.totalorder %s40, %s43
      %p49 = scmp.eq.s32.totalorder %s16, 0
      %p50 = por %p48, %p49
      %p51 = scmp.ne.s32.totalorder %s40, %s43
      %p52 = scmp.eq.s32.totalorder %s21, 1
      %p53 = por %p51, %p52
      %p54 = scmp.ne.s32.totalorder %s43, %s44
      %p55 = scmp.eq.s32.totalorder %s21, 0
      %p56 = por %p54, %p55
      %p57 = scmp.ne.s32.totalorder %s43, %s44
      %p58 = scmp.eq.s32.totalorder %s22, 1
      %p59 = por %p57, %p58
      %p61 = scmp.ne.s32.totalorder %s44, %s60
      %p62 = scmp.eq.s32.totalorder %s22, 0
      %p63 = por %p61, %p62
      %s65 = sadd.s32 %s64, 1
      %p68 = scmp.eq.s32.totalorder %s16, 1
      %p69 = scmp.ne.s32.totalorder %s64, %s66
      %p70 = scmp.eq.s32.totalorder %s16, 0
      %p71 = por %p69, %p70
      %p72 = scmp.ne.s32.totalorder %s64, %s66
      %p73 = scmp.eq.s32.totalorder %s21, 1
      %p74 = por %p72, %p73
      %p75 = scmp.ne.s32.totalorder %s66, %s67
      %p76 = scmp.eq.s32.totalorder %s21, 0
      %p77 = por %p75, %p76
      %p78 = scmp.ne.s32.totalorder %s66, %s67
      %p79 = scmp.eq.s32.totalorder %s22, 1
      %p80 = por %p78, %p79
      %p82 = scmp.ne.s32.totalorder %s67, %s81
      %p83 = scmp.eq.s32.totalorder %s22, 0
      %p84 = por %p82, %p83
      %s86 = sadd.s32 %s85, 1
      %p89 = scmp.eq.s32.totalorder %s16, 1
      %p90 = scmp.ne.s32.totalorder %s85, %s87
      %p91 = scmp.eq.s32.totalorder %s16, 0
      %p92 = por %p90, %p91
      %p93 = scmp.ne.s32.totalorder %s85, %s87
      %p94 = scmp.eq.s32.totalorder %s21, 1
      %p95 = por %p93, %p94
      %p96 = scmp.ne.s32.totalorder %s87, %s88
      %p97 = scmp.eq.s32.totalorder %s21, 0
      %p98 = por %p96, %p97
      %p99 = scmp.ne.s32.totalorder %s87, %s88
      %p100 = scmp.eq.s32.totalorder %s22, 1
      %p101 = por %p99, %p100
      %p103 = scmp.ne.s32.totalorder %s88, %s102
      %p104 = scmp.eq.s32.totalorder %s22, 0
      %p105 = por %p103, %p104
      %s106 = ssub.s32 %s23, %s35
      %s107 = ssub.s32 %s24, %s31
      %s108 = sor.u32 %s106, %s107
      %p109 = scmp.eq.s32.totalorder %s108, 0
      %s111 = sadd.s32 %s110, 1
      %s112 = scalar_select %p109, %s110, %s111
      %p115 = pneg %p109
      %p116 = scmp.eq.s32.totalorder %s16, 1
      %p117 = por %p115, %p116
      %p118 = scmp.ne.s32.totalorder %s110, %s113
      %p119 = scmp.eq.s32.totalorder %s16, 0
      %p120 = por %p118, %p119
      %p121 = scmp.ne.s32.totalorder %s110, %s113
      %p122 = scmp.eq.s32.totalorder %s21, 1
      %p123 = por %p121, %p122
      %p124 = scmp.ne.s32.totalorder %s113, %s114
      %p125 = scmp.eq.s32.totalorder %s21, 0
      %p126 = por %p124, %p125
      %p127 = scmp.ne.s32.totalorder %s113, %s114
      %p128 = scmp.eq.s32.totalorder %s22, 1
      %p129 = por %p127, %p128
      %p131 = scmp.ne.s32.totalorder %s114, %s130
      %p132 = scmp.eq.s32.totalorder %s22, 0
      %p133 = por %p131, %p132
      %p134 = scmp.le.s32.totalorder 1, %s16
      %p135 = scmp.lt.s32.totalorder %s16, 3
      %p136 = pnand %p134, %p135
      %p137 = pneg %p136
      // Predicated region
      $region9: #{tpu_custom_call.1} parent=5 // pred_check
        _
      $region10: #{tpu_custom_call.1} parent=5 // pred_check_branch
        %139 = sbr.rel (%p136) target = $region12
      $region11: #{tpu_custom_call.1} parent=5 // pred_region
        %s140 = ssub.s32 %s16, 1
        // Predicated region
        $region13: #{tpu_custom_call.1} parent=11 // pred_check
          %p141 = pneg %p77
        $region14: #{tpu_custom_call.1} parent=11 // pred_check_branch
          %143 = sbr.rel (%p141) target = $region16
        $region15: #{tpu_custom_call.1} parent=11 // pred_region
          %s145 = ssub.s32 1024, 1024
          %146 = vsyncadd [#allocation6], %s145
          %s147 = sshll.u32 [#allocation5], 4
          %s148 = int_to_ptr.vmem [resolvable:$true] %s147
          %153 = dma.hbm_to_vmem [thread:$0]  %s1, 1024, %s148, [#allocation6], 64, 64, 4
        $region16: #{tpu_custom_call.1} parent=11 // pred_fallthru
          _
        // Predicated region
        $region17: #{tpu_custom_call.1} parent=11 // pred_check
          %p154 = pneg %p98
        $region18: #{tpu_custom_call.1} parent=11 // pred_check_branch
          %156 = sbr.rel (%p154) target = $region20
        $region19: #{tpu_custom_call.1} parent=11 // pred_region
          _
        $region20: #{tpu_custom_call.1} parent=11 // pred_fallthru
          _
      $region12: #{tpu_custom_call.1} parent=5 // pred_fallthru
        _
      %p157 = scmp.lt.s32.totalorder %s16, 2
      // Predicated region
      $region21: #{tpu_custom_call.1} parent=5 // pred_check
        %p158 = pneg %p157
      $region22: #{tpu_custom_call.1} parent=5 // pred_check_branch
        %160 = sbr.rel (%p158) target = $region24
      $region23: #{tpu_custom_call.1} parent=5 // pred_region
        // Predicated region
        $region25: #{tpu_custom_call.1} parent=23 // pred_check
          %p161 = pneg %p50
        $region26: #{tpu_custom_call.1} parent=23 // pred_check_branch
          %163 = sbr.rel (%p161) target = $region28
        $region27: #{tpu_custom_call.1} parent=23 // pred_region
          %s164 = sand.u32 %s40, 1
          %s165 = scalar_lea.sflag [#allocation3], %s164
          %s166 = sand.u32 %s40, 1
          %s167 = smul.addr %s166, 128
          %s168 = scalar_lea.vmem [#allocation2], %s167
          %s169 = smul.u32 32, %s24
          %s171 = ssub.s32 2048, 2048
          %172 = vsyncadd %s165, %s171
          %s173 = smul.addr %s23, 32
          %s174 = sadd.s32 %s169, %s173
          %s175 = smul.addr %s174, 64
          %s176 = scalar_lea.hbm %s0, %s175
          %s177 = sshll.u32 %s168, 4
          %s178 = int_to_ptr.vmem [resolvable:$true] %s177
          %183 = dma.hbm_to_vmem [thread:$0]  %s176, 2048, %s178, %s165, 64, 64, 4
        $region28: #{tpu_custom_call.1} parent=23 // pred_fallthru
          _
      $region24: #{tpu_custom_call.1} parent=5 // pred_fallthru
        _
      %p184 = scmp.le.s32.totalorder 1, %s16
      %p185 = scmp.lt.s32.totalorder %s16, 3
      %p186 = pnand %p184, %p185
      %p187 = pneg %p186
      // Predicated region
      $region29: #{tpu_custom_call.1} parent=5 // pred_check
        _
      $region30: #{tpu_custom_call.1} parent=5 // pred_check_branch
        %189 = sbr.rel (%p186) target = $region32
      $region31: #{tpu_custom_call.1} parent=5 // pred_region
        %s190 = ssub.s32 %s16, 1
        %s191 = sand.u32 %s43, 1
        %s192 = scalar_lea.sflag [#allocation3], %s191
        %s193 = sand.u32 %s43, 1
        %s194 = smul.addr %s193, 128
        %s195 = scalar_lea.vmem [#allocation2], %s194
        // Predicated region
        $region33: #{tpu_custom_call.1} parent=31 // pred_check
          %p196 = pneg %p56
        $region34: #{tpu_custom_call.1} parent=31 // pred_check_branch
          %198 = sbr.rel (%p196) target = $region36
        $region35: #{tpu_custom_call.1} parent=31 // pred_region
          %199 = dma.done %s192, 2048
        $region36: #{tpu_custom_call.1} parent=31 // pred_fallthru
          _
        // Predicated region
        $region37: #{tpu_custom_call.1} parent=31 // pred_check
          %p200 = pneg %p77
        $region38: #{tpu_custom_call.1} parent=31 // pred_check_branch
          %202 = sbr.rel (%p200) target = $region40
        $region39: #{tpu_custom_call.1} parent=31 // pred_region
          %203 = dma.done [#allocation6], 1024
        $region40: #{tpu_custom_call.1} parent=31 // pred_fallthru
          _
        %s204 = sand.u32 %s43, 1
        %s205 = scalar_lea.sflag [#allocation3], %s204
        %s206 = sand.u32 %s43, 1
        %s207 = smul.addr %s206, 128
        %s208 = scalar_lea.vmem [#allocation2], %s207
        %p209 = pneg %p56
        %p210 = pneg %p53
        %p211 = pneg %p77
        %p212 = pneg %p74
        %p213 = pneg %p98
        %p214 = pneg %p95
        %p215 = pneg %p126
        %p216 = pneg %p123
        %s217 = sand.u32 %s113, 1
        %s218 = scalar_lea.sflag [#allocation4], %s217
        %s219 = sand.u32 %s113, 1
        %s220 = smul.addr %s219, 128
        %s221 = scalar_lea.vmem [#allocation7], %s220
        %s222 = smul.u32 32, %s26
        %s223 = smul.u32 32, %s26
        %v225 = vld [vmem:[%s195] sm:$0xf]
        %v226 = vld [vmem:[%s195 + $0x4] sm:$0xf]
        %v227 = vld [vmem:[%s195 + $0x8] sm:$0xf]
        %v228 = vld [vmem:[%s195 + $0xc] sm:$0xf]
        %v229 = vld [vmem:[%s195 + $0x10] sm:$0xf]
        %v230 = vld [vmem:[%s195 + $0x14] sm:$0xf]
        %v231 = vld [vmem:[%s195 + $0x18] sm:$0xf]
        %v232 = vld [vmem:[%s195 + $0x1c] sm:$0xf]
        %v233 = vld [vmem:[%s195 + $0x20] sm:$0xf]
        %v234 = vld [vmem:[%s195 + $0x24] sm:$0xf]
        %v235 = vld [vmem:[%s195 + $0x28] sm:$0xf]
        %v236 = vld [vmem:[%s195 + $0x2c] sm:$0xf]
        %v237 = vld [vmem:[%s195 + $0x30] sm:$0xf]
        %v238 = vld [vmem:[%s195 + $0x34] sm:$0xf]
        %v239 = vld [vmem:[%s195 + $0x38] sm:$0xf]
        %v240 = vld [vmem:[%s195 + $0x3c] sm:$0xf]
        %v241 = vld [vmem:[%s195 + $0x40] sm:$0xf]
        %v242 = vld [vmem:[%s195 + $0x44] sm:$0xf]
        %v243 = vld [vmem:[%s195 + $0x48] sm:$0xf]
        %v244 = vld [vmem:[%s195 + $0x4c] sm:$0xf]
        %v245 = vld [vmem:[%s195 + $0x50] sm:$0xf]
        %v246 = vld [vmem:[%s195 + $0x54] sm:$0xf]
        %v247 = vld [vmem:[%s195 + $0x58] sm:$0xf]
        %v248 = vld [vmem:[%s195 + $0x5c] sm:$0xf]
        %v249 = vld [vmem:[%s195 + $0x60] sm:$0xf]
        %v250 = vld [vmem:[%s195 + $0x64] sm:$0xf]
        %v251 = vld [vmem:[%s195 + $0x68] sm:$0xf]
        %v252 = vld [vmem:[%s195 + $0x6c] sm:$0xf]
        %v253 = vld [vmem:[%s195 + $0x70] sm:$0xf]
        %v254 = vld [vmem:[%s195 + $0x74] sm:$0xf]
        %v255 = vld [vmem:[%s195 + $0x78] sm:$0xf]
        %v256 = vld [vmem:[%s195 + $0x7c] sm:$0xf]
        %v257 = vld [vmem:[#allocation5] sm:$0xf]
        %v258 = vld [vmem:[#allocation5 + $0x4] sm:$0xf]
        %v259 = vld [vmem:[#allocation5 + $0x8] sm:$0xf]
        %v260 = vld [vmem:[#allocation5 + $0xc] sm:$0xf]
        %v261 = vld [vmem:[#allocation5 + $0x10] sm:$0xf]
        %v262 = vld [vmem:[#allocation5 + $0x14] sm:$0xf]
        %v263 = vld [vmem:[#allocation5 + $0x18] sm:$0xf]
        %v264 = vld [vmem:[#allocation5 + $0x1c] sm:$0xf]
        %v265 = vld [vmem:[#allocation5 + $0x20] sm:$0xf]
        %v266 = vld [vmem:[#allocation5 + $0x24] sm:$0xf]
        %v267 = vld [vmem:[#allocation5 + $0x28] sm:$0xf]
        %v268 = vld [vmem:[#allocation5 + $0x2c] sm:$0xf]
        %v269 = vld [vmem:[#allocation5 + $0x30] sm:$0xf]
        %v270 = vld [vmem:[#allocation5 + $0x34] sm:$0xf]
        %v271 = vld [vmem:[#allocation5 + $0x38] sm:$0xf]
        %v272 = vld [vmem:[#allocation5 + $0x3c] sm:$0xf]
        %v273 = vld [vmem:[%s2] sm:$0x1]
        %v275 = vlaneseq
        %v276 = vshrl.u32 %v275, 7
        %v277 = vsub.s32 0, %v276
        %v278 = vrot.slane %v273, %v277
        %v312 = vunpack.c.l.b16 %v225
        %v313 = vunpack.c.l.b16 %v226
        %v314 = vunpack.c.l.b16 %v227
        %v315 = vunpack.c.l.b16 %v228
        %v316 = vunpack.c.l.b16 %v229
        %v317 = vunpack.c.l.b16 %v230
        %v318 = vunpack.c.l.b16 %v231
        %v319 = vunpack.c.l.b16 %v232
        %v320 = vunpack.c.l.b16 %v233
        %v321 = vunpack.c.l.b16 %v234
        %v322 = vunpack.c.l.b16 %v235
        %v323 = vunpack.c.l.b16 %v236
        %v324 = vunpack.c.l.b16 %v237
        %v325 = vunpack.c.l.b16 %v238
        %v326 = vunpack.c.l.b16 %v239
        %v327 = vunpack.c.l.b16 %v240
        %v328 = vunpack.c.l.b16 %v241
        %v329 = vunpack.c.l.b16 %v242
        %v330 = vunpack.c.l.b16 %v243
        %v331 = vunpack.c.l.b16 %v244
        %v332 = vunpack.c.l.b16 %v245
        %v333 = vunpack.c.l.b16 %v246
        %v334 = vunpack.c.l.b16 %v247
        %v335 = vunpack.c.l.b16 %v248
        %v336 = vunpack.c.l.b16 %v249
        %v337 = vunpack.c.l.b16 %v250
        %v338 = vunpack.c.l.b16 %v251
        %v339 = vunpack.c.l.b16 %v252
        %v340 = vunpack.c.l.b16 %v253
        %v341 = vunpack.c.l.b16 %v254
        %v342 = vunpack.c.l.b16 %v255
        %v343 = vunpack.c.l.b16 %v256
        %v344 = vpack.c.b16 %v313, %v312
        %v345 = vpack.c.b16 %v315, %v314
        %v346 = vpack.c.b16 %v317, %v316
        %v347 = vpack.c.b16 %v319, %v318
        %v348 = vpack.c.b16 %v321, %v320
        %v349 = vpack.c.b16 %v323, %v322
        %v350 = vpack.c.b16 %v325, %v324
        %v351 = vpack.c.b16 %v327, %v326
        %v352 = vpack.c.b16 %v329, %v328
        %v353 = vpack.c.b16 %v331, %v330
        %v354 = vpack.c.b16 %v333, %v332
        %v355 = vpack.c.b16 %v335, %v334
        %v356 = vpack.c.b16 %v337, %v336
        %v357 = vpack.c.b16 %v339, %v338
        %v358 = vpack.c.b16 %v341, %v340
        %v359 = vpack.c.b16 %v343, %v342
        %v392 = vunpack.c.l.b16 %v257
        %v393 = vunpack.c.l.b16 %v258
        %v394 = vunpack.c.l.b16 %v259
        %v395 = vunpack.c.l.b16 %v260
        %v396 = vunpack.c.l.b16 %v261
        %v397 = vunpack.c.l.b16 %v262
        %v398 = vunpack.c.l.b16 %v263
        %v399 = vunpack.c.l.b16 %v264
        %v400 = vunpack.c.l.b16 %v265
        %v401 = vunpack.c.l.b16 %v266
        %v402 = vunpack.c.l.b16 %v267
        %v403 = vunpack.c.l.b16 %v268
        %v404 = vunpack.c.l.b16 %v269
        %v405 = vunpack.c.l.b16 %v270
        %v406 = vunpack.c.l.b16 %v271
        %v407 = vunpack.c.l.b16 %v272
        %v408 = vpack.c.b16 %v393, %v392
        %v409 = vpack.c.b16 %v395, %v394
        %v410 = vpack.c.b16 %v397, %v396
        %v411 = vpack.c.b16 %v399, %v398
        %v412 = vpack.c.b16 %v401, %v400
        %v413 = vpack.c.b16 %v403, %v402
        %v414 = vpack.c.b16 %v405, %v404
        %v415 = vpack.c.b16 %v407, %v406
        %424 = vmatprep.subr.bf16.mxu0 0
        %425 = vmatpush1.bf16.msra.mxu0 %v415
        %426 = vmatprep.subr.bf16.mxu0 0
        %427 = vmatpush1.bf16.msra.mxu0 %v414
        %428 = vmatprep.subr.bf16.mxu0 0
        %429 = vmatpush1.bf16.msra.mxu0 %v413
        %430 = vmatprep.subr.bf16.mxu0 0
        %431 = vmatpush1.bf16.msra.mxu0 %v412
        %432 = vmatprep.subr.bf16.mxu0 0
        %433 = vmatpush1.bf16.msra.mxu0 %v411
        %434 = vmatprep.subr.bf16.mxu0 0
        %435 = vmatpush1.bf16.msra.mxu0 %v410
        %436 = vmatprep.subr.bf16.mxu0 0
        %437 = vmatpush1.bf16.msra.mxu0 %v409
        %438 = vmatprep.subr.bf16.mxu0 0
        %439 = vmatpush1.bf16.msra.mxu0 %v408
        %440 = vmatprep.subr.bf16.mxu0 0
        %441 = vmatpush2.bf16.msra.mxu0 0
        %442 = vmatprep.subr.bf16.mxu0 0
        %443 = vmatpush2.bf16.msra.mxu0 0
        %444 = vmatprep.subr.bf16.mxu0 0
        %445 = vmatpush2.bf16.msra.mxu0 0
        %446 = vmatprep.subr.bf16.mxu0 0
        %447 = vmatpush2.bf16.msra.mxu0 0
        %448 = vmatprep.subr.bf16.mxu0 0
        %449 = vmatpush2.bf16.msra.mxu0 0
        %450 = vmatprep.subr.bf16.mxu0 0
        %451 = vmatpush2.bf16.msra.mxu0 0
        %452 = vmatprep.subr.bf16.mxu0 0
        %453 = vmatpush2.bf16.msra.mxu0 0
        %454 = vmatprep.subr.bf16.mxu0 0
        %455 = vmatpush2.bf16.msra.mxu0 0
        %456 = vmatprep.mubr.bf16.mxu0 0
        %457 = vmatmul.mubr.bf16.gmra.mxu0 %v344
        %v458 = vpop.f32.mrf.mxu0
        %v459 = vadd.f32 %v278, %v458
        %v460 = vpop.f32.mrf.mxu0
        %v461 = vpop.f32.mrf.mxu0
        %v462 = vadd.f32 %v278, %v461
        %v463 = vpop.f32.mrf.mxu0
        %464 = vmatprep.mubr.bf16.mxu0 0
        %465 = vmatmul.mubr.bf16.gmra.mxu0 %v345
        %v466 = vpop.f32.mrf.mxu0
        %v467 = vadd.f32 %v278, %v466
        %v468 = vpop.f32.mrf.mxu0
        %v469 = vpop.f32.mrf.mxu0
        %v470 = vadd.f32 %v278, %v469
        %v471 = vpop.f32.mrf.mxu0
        %472 = vmatprep.mubr.bf16.mxu0 0
        %473 = vmatmul.mubr.bf16.gmra.mxu0 %v346
        %v474 = vpop.f32.mrf.mxu0
        %v475 = vadd.f32 %v278, %v474
        %v476 = vpop.f32.mrf.mxu0
        %v477 = vpop.f32.mrf.mxu0
        %v478 = vadd.f32 %v278, %v477
        %v479 = vpop.f32.mrf.mxu0
        %480 = vmatprep.mubr.bf16.mxu0 0
        %481 = vmatmul.mubr.bf16.gmra.mxu0 %v347
        %v482 = vpop.f32.mrf.mxu0
        %v483 = vadd.f32 %v278, %v482
        %v484 = vpop.f32.mrf.mxu0
        %v485 = vpop.f32.mrf.mxu0
        %v486 = vadd.f32 %v278, %v485
        %v487 = vpop.f32.mrf.mxu0
        %488 = vmatprep.mubr.bf16.mxu0 0
        %489 = vmatmul.mubr.bf16.gmra.mxu0 %v348
        %v490 = vpop.f32.mrf.mxu0
        %v491 = vadd.f32 %v278, %v490
        %v492 = vpop.f32.mrf.mxu0
        %v493 = vpop.f32.mrf.mxu0
        %v494 = vadd.f32 %v278, %v493
        %v495 = vpop.f32.mrf.mxu0
        %496 = vmatprep.mubr.bf16.mxu0 0
        %497 = vmatmul.mubr.bf16.gmra.mxu0 %v349
        %v498 = vpop.f32.mrf.mxu0
        %v499 = vadd.f32 %v278, %v498
        %v500 = vpop.f32.mrf.mxu0
        %v501 = vpop.f32.mrf.mxu0
        %v502 = vadd.f32 %v278, %v501
        %v503 = vpop.f32.mrf.mxu0
        %504 = vmatprep.mubr.bf16.mxu0 0
        %505 = vmatmul.mubr.bf16.gmra.mxu0 %v350
        %v506 = vpop.f32.mrf.mxu0
        %v507 = vadd.f32 %v278, %v506
        %v508 = vpop.f32.mrf.mxu0
        %v509 = vpop.f32.mrf.mxu0
        %v510 = vadd.f32 %v278, %v509
        %v511 = vpop.f32.mrf.mxu0
        %512 = vmatprep.mubr.bf16.mxu0 0
        %513 = vmatmul.mubr.bf16.gmra.mxu0 %v351
        %v514 = vpop.f32.mrf.mxu0
        %v515 = vadd.f32 %v278, %v514
        %v516 = vpop.f32.mrf.mxu0
        %v517 = vpop.f32.mrf.mxu0
        %v518 = vadd.f32 %v278, %v517
        %v519 = vpop.f32.mrf.mxu0
        %520 = vmatprep.mubr.bf16.mxu0 0
        %521 = vmatmul.mubr.bf16.gmra.mxu0 %v352
        %v522 = vpop.f32.mrf.mxu0
        %v523 = vadd.f32 %v278, %v522
        %v524 = vpop.f32.mrf.mxu0
        %v525 = vpop.f32.mrf.mxu0
        %v526 = vadd.f32 %v278, %v525
        %v527 = vpop.f32.mrf.mxu0
        %528 = vmatprep.mubr.bf16.mxu0 0
        %529 = vmatmul.mubr.bf16.gmra.mxu0 %v353
        %v530 = vpop.f32.mrf.mxu0
        %v531 = vadd.f32 %v278, %v530
        %v532 = vpop.f32.mrf.mxu0
        %v533 = vpop.f32.mrf.mxu0
        %v534 = vadd.f32 %v278, %v533
        %v535 = vpop.f32.mrf.mxu0
        %536 = vmatprep.mubr.bf16.mxu0 0
        %537 = vmatmul.mubr.bf16.gmra.mxu0 %v354
        %v538 = vpop.f32.mrf.mxu0
        %v539 = vadd.f32 %v278, %v538
        %v540 = vpop.f32.mrf.mxu0
        %v541 = vpop.f32.mrf.mxu0
        %v542 = vadd.f32 %v278, %v541
        %v543 = vpop.f32.mrf.mxu0
        %544 = vmatprep.mubr.bf16.mxu0 0
        %545 = vmatmul.mubr.bf16.gmra.mxu0 %v355
        %v546 = vpop.f32.mrf.mxu0
        %v547 = vadd.f32 %v278, %v546
        %v548 = vpop.f32.mrf.mxu0
        %v549 = vpop.f32.mrf.mxu0
        %v550 = vadd.f32 %v278, %v549
        %v551 = vpop.f32.mrf.mxu0
        %552 = vmatprep.mubr.bf16.mxu0 0
        %553 = vmatmul.mubr.bf16.gmra.mxu0 %v356
        %v554 = vpop.f32.mrf.mxu0
        %v555 = vadd.f32 %v278, %v554
        %v556 = vpop.f32.mrf.mxu0
        %v557 = vpop.f32.mrf.mxu0
        %v558 = vadd.f32 %v278, %v557
        %v559 = vpop.f32.mrf.mxu0
        %560 = vmatprep.mubr.bf16.mxu0 0
        %561 = vmatmul.mubr.bf16.gmra.mxu0 %v357
        %v562 = vpop.f32.mrf.mxu0
        %v563 = vadd.f32 %v278, %v562
        %v564 = vpop.f32.mrf.mxu0
        %v565 = vpop.f32.mrf.mxu0
        %v566 = vadd.f32 %v278, %v565
        %v567 = vpop.f32.mrf.mxu0
        %568 = vmatprep.mubr.bf16.mxu0 0
        %569 = vmatmul.mubr.bf16.gmra.mxu0 %v358
        %v570 = vpop.f32.mrf.mxu0
        %v571 = vadd.f32 %v278, %v570
        %v572 = vpop.f32.mrf.mxu0
        %v573 = vpop.f32.mrf.mxu0
        %v574 = vadd.f32 %v278, %v573
        %v575 = vpop.f32.mrf.mxu0
        %576 = vmatprep.mubr.bf16.mxu0 0
        %577 = vmatmul.mubr.bf16.gmra.mxu0 %v359
        %v578 = vpop.f32.mrf.mxu0
        %v579 = vadd.f32 %v278, %v578
        %v580 = vpop.f32.mrf.mxu0
        %v581 = vpop.f32.mrf.mxu0
        %v582 = vadd.f32 %v278, %v581
        %v583 = vpop.f32.mrf.mxu0
        %584 = vdwg.mxu0
        %v585 = vpack.c.bf16 %v462, %v459
        %v586 = vpack.c.bf16 %v470, %v467
        %v587 = vpack.c.bf16 %v478, %v475
        %v588 = vpack.c.bf16 %v486, %v483
        %v589 = vpack.c.bf16 %v494, %v491
        %v590 = vpack.c.bf16 %v502, %v499
        %v591 = vpack.c.bf16 %v510, %v507
        %v592 = vpack.c.bf16 %v518, %v515
        %v593 = vpack.c.bf16 %v526, %v523
        %v594 = vpack.c.bf16 %v534, %v531
        %v595 = vpack.c.bf16 %v542, %v539
        %v596 = vpack.c.bf16 %v550, %v547
        %v597 = vpack.c.bf16 %v558, %v555
        %v598 = vpack.c.bf16 %v566, %v563
        %v599 = vpack.c.bf16 %v574, %v571
        %v600 = vpack.c.bf16 %v582, %v579
        %v617 = vunpack.c.l.b16 %v585
        %v618 = vunpack.c.h.b16 %v585
        %v619 = vunpack.c.l.b16 %v586
        %v620 = vunpack.c.h.b16 %v586
        %v621 = vunpack.c.l.b16 %v587
        %v622 = vunpack.c.h.b16 %v587
        %v623 = vunpack.c.l.b16 %v588
        %v624 = vunpack.c.h.b16 %v588
        %v625 = vunpack.c.l.b16 %v589
        %v626 = vunpack.c.h.b16 %v589
        %v627 = vunpack.c.l.b16 %v590
        %v628 = vunpack.c.h.b16 %v590
        %v629 = vunpack.c.l.b16 %v591
        %v630 = vunpack.c.h.b16 %v591
        %v631 = vunpack.c.l.b16 %v592
        %v632 = vunpack.c.h.b16 %v592
        %v633 = vunpack.c.l.b16 %v593
        %v634 = vunpack.c.h.b16 %v593
        %v635 = vunpack.c.l.b16 %v594
        %v636 = vunpack.c.h.b16 %v594
        %v637 = vunpack.c.l.b16 %v595
        %v638 = vunpack.c.h.b16 %v595
        %v639 = vunpack.c.l.b16 %v596
        %v640 = vunpack.c.h.b16 %v596
        %v641 = vunpack.c.l.b16 %v597
        %v642 = vunpack.c.h.b16 %v597
        %v643 = vunpack.c.l.b16 %v598
        %v644 = vunpack.c.h.b16 %v598
        %v645 = vunpack.c.l.b16 %v599
        %v646 = vunpack.c.h.b16 %v599
        %v647 = vunpack.c.l.b16 %v600
        %v648 = vunpack.c.h.b16 %v600
        %v649 = vpack.c.b16 %v617, %v617
        %v650 = vpack.c.b16 %v618, %v618
        %v651 = vpack.c.b16 %v619, %v619
        %v652 = vpack.c.b16 %v620, %v620
        %v653 = vpack.c.b16 %v621, %v621
        %v654 = vpack.c.b16 %v622, %v622
        %v655 = vpack.c.b16 %v623, %v623
        %v656 = vpack.c.b16 %v624, %v624
        %v657 = vpack.c.b16 %v625, %v625
        %v658 = vpack.c.b16 %v626, %v626
        %v659 = vpack.c.b16 %v627, %v627
        %v660 = vpack.c.b16 %v628, %v628
        %v661 = vpack.c.b16 %v629, %v629
        %v662 = vpack.c.b16 %v630, %v630
        %v663 = vpack.c.b16 %v631, %v631
        %v664 = vpack.c.b16 %v632, %v632
        %v665 = vpack.c.b16 %v633, %v633
        %v666 = vpack.c.b16 %v634, %v634
        %v667 = vpack.c.b16 %v635, %v635
        %v668 = vpack.c.b16 %v636, %v636
        %v669 = vpack.c.b16 %v637, %v637
        %v670 = vpack.c.b16 %v638, %v638
        %v671 = vpack.c.b16 %v639, %v639
        %v672 = vpack.c.b16 %v640, %v640
        %v673 = vpack.c.b16 %v641, %v641
        %v674 = vpack.c.b16 %v642, %v642
        %v675 = vpack.c.b16 %v643, %v643
        %v676 = vpack.c.b16 %v644, %v644
        %v677 = vpack.c.b16 %v645, %v645
        %v678 = vpack.c.b16 %v646, %v646
        %v679 = vpack.c.b16 %v647, %v647
        %v680 = vpack.c.b16 %v648, %v648
        %713 = vst [vmem:[%s221] sm:$0xf] %v649
        %714 = vst [vmem:[%s221 + $0x4] sm:$0xf] %v650
        %715 = vst [vmem:[%s221 + $0x8] sm:$0xf] %v651
        %716 = vst [vmem:[%s221 + $0xc] sm:$0xf] %v652
        %717 = vst [vmem:[%s221 + $0x10] sm:$0xf] %v653
        %718 = vst [vmem:[%s221 + $0x14] sm:$0xf] %v654
        %719 = vst [vmem:[%s221 + $0x18] sm:$0xf] %v655
        %720 = vst [vmem:[%s221 + $0x1c] sm:$0xf] %v656
        %721 = vst [vmem:[%s221 + $0x20] sm:$0xf] %v657
        %722 = vst [vmem:[%s221 + $0x24] sm:$0xf] %v658
        %723 = vst [vmem:[%s221 + $0x28] sm:$0xf] %v659
        %724 = vst [vmem:[%s221 + $0x2c] sm:$0xf] %v660
        %725 = vst [vmem:[%s221 + $0x30] sm:$0xf] %v661
        %726 = vst [vmem:[%s221 + $0x34] sm:$0xf] %v662
        %727 = vst [vmem:[%s221 + $0x38] sm:$0xf] %v663
        %728 = vst [vmem:[%s221 + $0x3c] sm:$0xf] %v664
        %729 = vst [vmem:[%s221 + $0x40] sm:$0xf] %v665
        %730 = vst [vmem:[%s221 + $0x44] sm:$0xf] %v666
        %731 = vst [vmem:[%s221 + $0x48] sm:$0xf] %v667
        %732 = vst [vmem:[%s221 + $0x4c] sm:$0xf] %v668
        %733 = vst [vmem:[%s221 + $0x50] sm:$0xf] %v669
        %734 = vst [vmem:[%s221 + $0x54] sm:$0xf] %v670
        %735 = vst [vmem:[%s221 + $0x58] sm:$0xf] %v671
        %736 = vst [vmem:[%s221 + $0x5c] sm:$0xf] %v672
        %737 = vst [vmem:[%s221 + $0x60] sm:$0xf] %v673
        %738 = vst [vmem:[%s221 + $0x64] sm:$0xf] %v674
        %739 = vst [vmem:[%s221 + $0x68] sm:$0xf] %v675
        %740 = vst [vmem:[%s221 + $0x6c] sm:$0xf] %v676
        %741 = vst [vmem:[%s221 + $0x70] sm:$0xf] %v677
        %742 = vst [vmem:[%s221 + $0x74] sm:$0xf] %v678
        %743 = vst [vmem:[%s221 + $0x78] sm:$0xf] %v679
        %744 = vst [vmem:[%s221 + $0x7c] sm:$0xf] %v680
        %s745 = sand.u32 %s113, 1
        %s746 = scalar_lea.sflag [#allocation4], %s745
        %s747 = sand.u32 %s113, 1
        %s748 = smul.addr %s747, 128
        %s749 = scalar_lea.vmem [#allocation7], %s748
        // Predicated region
        $region41: #{tpu_custom_call.1} parent=31 // pred_check
          %p750 = pneg %p123
        $region42: #{tpu_custom_call.1} parent=31 // pred_check_branch
          %752 = sbr.rel (%p750) target = $region44
        $region43: #{tpu_custom_call.1} parent=31 // pred_region
          %s753 = smul.u32 32, %s26
          %s755 = ssub.s32 2048, 2048
          %756 = vsyncadd %s746, %s755
          %s757 = smul.addr %s25, 32
          %s758 = sadd.s32 %s753, %s757
          %s759 = smul.addr %s758, 64
          %s760 = scalar_lea.hbm %s3, %s759
          %s761 = sshll.u32 %s749, 4
          %s762 = int_to_ptr.vmem [resolvable:$true] %s761
          %767 = dma.vmem_to_hbm [thread:$0]  %s762, 2048, %s760, %s746, 64, 64, 4
        $region44: #{tpu_custom_call.1} parent=31 // pred_fallthru
          _
      $region32: #{tpu_custom_call.1} parent=5 // pred_fallthru
        _
      %p768 = scmp.le.s32.totalorder 2, %s16
      // Predicated region
      $region45: #{tpu_custom_call.1} parent=5 // pred_check
        %p769 = pneg %p768
      $region46: #{tpu_custom_call.1} parent=5 // pred_check_branch
        %771 = sbr.rel (%p769) target = $region48
      $region47: #{tpu_custom_call.1} parent=5 // pred_region
        %s772 = ssub.s32 %s16, 2
        // Predicated region
        $region49: #{tpu_custom_call.1} parent=47 // pred_check
          %p773 = pneg %p129
        $region50: #{tpu_custom_call.1} parent=47 // pred_check_branch
          %775 = sbr.rel (%p773) target = $region52
        $region51: #{tpu_custom_call.1} parent=47 // pred_region
          %s776 = sand.u32 %s114, 1
          %s777 = scalar_lea.sflag [#allocation4], %s776
          %s778 = sand.u32 %s114, 1
          %s779 = smul.addr %s778, 128
          %s780 = scalar_lea.vmem [#allocation7], %s779
          %781 = dma.done %s777, 2048
        $region52: #{tpu_custom_call.1} parent=47 // pred_fallthru
          _
      $region48: #{tpu_custom_call.1} parent=5 // pred_fallthru
        _
    $region6: #{tpu_custom_call.1} parent=1 // loop_footer
      %s20 = sadd.s32 1, %s16
    $region7: #{tpu_custom_call.1} parent=1 // loop_footer_branch
      %15 = sbr.rel target = $region3
    $region8: #{tpu_custom_call.1} parent=1 // loop_exit
      _
    %782 = vsyncpa [#allocation3], 1
    %s783 = scalar_lea.sflag [#allocation3], 1
    %784 = vsyncpa %s783, 1
    %785 = vsyncpa [#allocation6], 1
    %786 = vsyncpa [#allocation4], 1
    %s787 = scalar_lea.sflag [#allocation4], 1
    %788 = vsyncpa %s787, 1

</llo_original>
